<compile_context>
chip_gen: v6e
topology: v6e:2x2x1
jax: 0.10.0
libtpu: 0.0.40
codegen_flags: <defaults>
</compile_context>

<pallas_src>
import functools

import jax
import jax.numpy as jnp
from jax import lax
from jax.experimental import pallas as pl
from jax.experimental.pallas import tpu as pltpu


# ----------------------------------------------------------------------------
# helpers
# ----------------------------------------------------------------------------
def _round_up(x, m):
    return ((x + m - 1) // m) * m


def _vmem_capacity_bytes():
    try:
        return int(pltpu.get_tpu_info().vmem_capacity_bytes)
    except Exception:
        return 64 * 1024 * 1024  # conservative (v7x per-TC) fallback


def _vmem_budget_bytes():
    # Budget used for tile selection: leave headroom for compiler scratch.
    cap = _vmem_capacity_bytes()
    return max(int(cap * 0.70) - (4 << 20), 8 << 20)


def _vmem_limit(required_bytes):
    cap = _vmem_capacity_bytes()
    return int(min(max(int(required_bytes * 1.25) + (4 << 20), 16 << 20),
                   int(cap * 0.75)))


def _choose_item_tile(n_pad, per_col_bytes, fixed_bytes, budget_bytes,
                      max_tile=4096):
    """Largest multiple-of-128 tile that divides n_pad and fits the budget."""
    best = 128
    t = 128
    cap = min(n_pad, max_tile)
    while t <= cap:
        if n_pad % t == 0 and fixed_bytes + per_col_bytes * t <= budget_bytes:
            best = t
        t += 128
    return best


def _choose_batch_tile(batch):
    tb = min(_round_up(batch, 8), 256)
    b_pad = _round_up(batch, tb)
    return tb, b_pad


# ----------------------------------------------------------------------------
# Fused kernel: student (+ optional teacher) rating matmuls + KD SSE
# grid = (batch tiles [parallel], item tiles [arbitrary])
# ----------------------------------------------------------------------------
def _kd_fwd_kernel(emit_rt, us_ref, vs_ref, ut_ref, vt_ref, *out_and_scratch):
    if emit_rt:
        rs_ref, rt_ref, sse_ref, acc_ref = out_and_scratch
    else:
        rs_ref, sse_ref, acc_ref = out_and_scratch
        rt_ref = None

    j = pl.program_id(1)

    @pl.when(j == 0)
    def _():
        acc_ref[...] = jnp.zeros_like(acc_ref)

    # Student / teacher ratings block: [tb, tn], accumulated in f32 on the MXU.
    rs = jnp.dot(us_ref[...], vs_ref[...], preferred_element_type=jnp.float32)
    rt = jnp.dot(ut_ref[...], vt_ref[...], preferred_element_type=jnp.float32)

    rs_ref[...] = rs.astype(rs_ref.dtype)
    if emit_rt:
        rt_ref[...] = rt.astype(rt_ref.dtype)

    # Per-step lane reduce into a tiny (tb, 1) accumulator (XLU slot has slack).
    diff = rs - rt
    acc_ref[...] += jnp.sum(diff * diff, axis=-1, keepdims=True)

    @pl.when(j == pl.num_programs(1) - 1)
    def _():
        tile_sse = jnp.sum(acc_ref[...])
        # Partial SSE for this batch tile; only [0, 0] is read back in JAX.
        sse_ref[...] = jnp.full(sse_ref.shape, tile_sse, jnp.float32)


def kd_ratings_and_sse(user_s, item_s_t, user_t, item_t_t, *,
                       emit_rt=True, out_dtype=jnp.bfloat16, tb=None):
    """user_s:[Bp,Ds], item_s_t:[Ds,Np], user_t:[Bp,Dt], item_t_t:[Dt,Np].

    Bp must be a multiple of 8 (and of tb), Np a multiple of 128.
    Returns (rs [Bp,Np] out_dtype, rt or None, sse scalar f32).
    """
    b_pad, d_s = user_s.shape
    d_t = user_t.shape[1]
    n_pad = item_s_t.shape[1]
    assert b_pad % 8 == 0, "batch must be padded to a multiple of 8"
    assert n_pad % 128 == 0, "item count must be padded to a multiple of 128"
    if tb is None:
        tb = min(b_pad, 256)
    assert b_pad % tb == 0
    nb = b_pad // tb

    in_bytes = jnp.dtype(user_s.dtype).itemsize
    out_bytes = jnp.dtype(out_dtype).itemsize
    n_out = 2 if emit_rt else 1

    # VMEM budget (double-buffered blocks) -> biggest item tile that fits.
    fixed = (2 * tb * (d_s + d_t) * in_bytes     # resident user blocks
             + tb * 4                            # (tb, 1) SSE accumulator
             + 2 * 8 * 128 * 4)                  # partial-SSE output block
    per_tn = (2 * (d_s + d_t) * in_bytes         # item tiles (student + teacher)
              + 2 * n_out * tb * out_bytes)      # rating output tiles
    tn = _choose_item_tile(n_pad, per_tn, fixed, _vmem_budget_bytes())
    nj = n_pad // tn
    required = fixed + per_tn * tn

    out_shapes = [jax.ShapeDtypeStruct((b_pad, n_pad), out_dtype)]
    out_specs = [pl.BlockSpec((tb, tn), lambda b, j: (b, j))]
    if emit_rt:
        out_shapes.append(jax.ShapeDtypeStruct((b_pad, n_pad), out_dtype))
        out_specs.append(pl.BlockSpec((tb, tn), lambda b, j: (b, j)))
    # Per-batch-tile partial SSE; (8, 128)-shaped blocks keep the store lane/
    # sublane aligned; only [b, 0, 0] carries the value.
    out_shapes.append(jax.ShapeDtypeStruct((nb, 8, 128), jnp.float32))
    out_specs.append(pl.BlockSpec((1, 8, 128), lambda b, j: (b, 0, 0)))

    grid_spec = pltpu.PrefetchScalarGridSpec(
        num_scalar_prefetch=0,
        grid=(nb, nj),
        in_specs=[
            # TODO(synk): pipeline_mode=pl.Buffered(1) on the user blocks and
            # Buffered(3) on the item tiles once profiled; kept default here.
            pl.BlockSpec((tb, d_s), lambda b, j: (b, 0)),
            pl.BlockSpec((d_s, tn), lambda b, j: (0, j)),
            pl.BlockSpec((tb, d_t), lambda b, j: (b, 0)),
            pl.BlockSpec((d_t, tn), lambda b, j: (0, j)),
        ],
        out_specs=out_specs,
        scratch_shapes=[pltpu.VMEM((tb, 1), jnp.float32)],
    )

    cost = pl.CostEstimate(
        flops=2 * b_pad * n_pad * (d_s + d_t),
        transcendentals=0,
        bytes_accessed=((b_pad + n_pad) * (d_s + d_t) * in_bytes
                        + n_out * b_pad * n_pad * out_bytes
                        + nb * 8 * 128 * 4),
    )

    outs = pl.pallas_call(
        functools.partial(_kd_fwd_kernel, emit_rt),
        out_shape=tuple(out_shapes),
        grid_spec=grid_spec,
        compiler_params=pltpu.CompilerParams(
            dimension_semantics=("parallel", "arbitrary"),
            vmem_limit_bytes=_vmem_limit(required),
        ),
        cost_estimate=cost,
    )(user_s, item_s_t, user_t, item_t_t)

    if emit_rt:
        rs, rt, sse_part = outs
    else:
        rs, sse_part = outs
        rt = None
    sse = jnp.sum(sse_part[:, 0, 0])
    return rs, rt, sse


# ----------------------------------------------------------------------------
# Ratings-only kernel (get_ratings: no teacher matmul, no SSE, fully parallel)
# ----------------------------------------------------------------------------
def _ratings_kernel(u_ref, v_ref, r_ref):
    r_ref[...] = jnp.dot(u_ref[...], v_ref[...],
                         preferred_element_type=jnp.float32).astype(r_ref.dtype)


def ratings_only(user_emb, item_emb_t, *, out_dtype=jnp.bfloat16, tb=None):
    """user_emb:[Bp,D], item_emb_t:[D,Np] -> ratings [Bp,Np] out_dtype."""
    b_pad, d = user_emb.shape
    n_pad = item_emb_t.shape[1]
    assert b_pad % 8 == 0 and n_pad % 128 == 0
    if tb is None:
        tb = min(b_pad, 256)
    assert b_pad % tb == 0
    nb = b_pad // tb

    in_bytes = jnp.dtype(user_emb.dtype).itemsize
    out_bytes = jnp.dtype(out_dtype).itemsize
    fixed = 2 * tb * d * in_bytes
    per_tn = 2 * d * in_bytes + 2 * tb * out_bytes
    tn = _choose_item_tile(n_pad, per_tn, fixed, _vmem_budget_bytes())
    nj = n_pad // tn
    required = fixed + per_tn * tn

    cost = pl.CostEstimate(
        flops=2 * b_pad * n_pad * d,
        transcendentals=0,
        bytes_accessed=(b_pad * d + d * n_pad) * in_bytes + b_pad * n_pad * out_bytes,
    )

    grid_spec = pltpu.PrefetchScalarGridSpec(
        num_scalar_prefetch=0,
        grid=(nb, nj),
        in_specs=[
            pl.BlockSpec((tb, d), lambda b, j: (b, 0)),
            pl.BlockSpec((d, tn), lambda b, j: (0, j)),
        ],
        out_specs=pl.BlockSpec((tb, tn), lambda b, j: (b, j)),
    )
    return pl.pallas_call(
        _ratings_kernel,
        out_shape=jax.ShapeDtypeStruct((b_pad, n_pad), out_dtype),
        grid_spec=grid_spec,
        compiler_params=pltpu.CompilerParams(
            dimension_semantics=("parallel", "parallel"),   # no cross-tile state
            vmem_limit_bytes=_vmem_limit(required),
        ),
        cost_estimate=cost,
    )(user_emb, item_emb_t)


# ----------------------------------------------------------------------------
# BaseKD wrapper (teacher = frozen MF recommender, student = smaller MF)
# ----------------------------------------------------------------------------
class BaseKDPallas:
    def __init__(self, num_users, num_items, d_teacher, d_student, lmbda, key,
                 table_dtype=jnp.bfloat16, ratings_dtype=jnp.bfloat16):
        self.lmbda = float(lmbda)
        self.num_items = int(num_items)
        self.table_dtype = table_dtype
        self.ratings_dtype = ratings_dtype

        k1, k2, k3, k4 = jax.random.split(key, 4)
        # Canonical parameters in f32 (teacher frozen; student trainable).
        self.teacher_user = 0.1 * jax.random.normal(k1, (num_users, d_teacher), jnp.float32)
        self.teacher_item = 0.1 * jax.random.normal(k2, (num_items, d_teacher), jnp.float32)
        self.student_user = 0.1 * jax.random.normal(k3, (num_users, d_student), jnp.float32)
        self.student_item = 0.1 * jax.random.normal(k4, (num_items, d_student), jnp.float32)

        # Pad the catalog to a multiple of 512 so the item tile never collapses
        # to 128/256; padded columns are zero in BOTH tables (=> 0 SSE contrib).
        self.n_pad = _round_up(self.num_items, 512)
        self._refresh_item_tables()

    def _refresh_item_tables(self):
        # TODO(synk): must be re-run after any optimizer update of student_item
        # (or make the transposed/padded bf16 table the canonical parameter).
        pad = self.n_pad - self.num_items
        self.student_item_t = jnp.pad(
            self.student_item.astype(self.table_dtype).T, ((0, 0), (0, pad)))  # [Ds, Np]
        self.teacher_item_t = jnp.pad(
            self.teacher_item.astype(self.table_dtype).T, ((0, 0), (0, pad)))  # [Dt, Np]

    # -- student ratings for a user batch over all items (no teacher work) ----
    def get_ratings(self, batch_users):
        batch = batch_users.shape[0]
        us = self.student_user[batch_users].astype(self.table_dtype)
        tb, b_pad = _choose_batch_tile(batch)
        if b_pad != batch:
            us = jnp.pad(us, ((0, b_pad - batch), (0, 0)))
        rs = ratings_only(us, self.student_item_t,
                          out_dtype=self.ratings_dtype, tb=tb)
        if b_pad == batch and self.n_pad == self.num_items:
            return rs
        return rs[:batch, :self.num_items]

    # -- loss-only path: never materializes the teacher rating matrix ---------
    def get_loss(self, data):
        loss, _, _ = self.forward(data, return_teacher_ratings=False)
        return loss

    # -- fused forward ---------------------------------------------------------
    def forward(self, data, return_teacher_ratings=True):
        """data = (batch_users, pos_items, neg_items) int32 index arrays."""
        batch_users, pos_items, neg_items = data
        batch = batch_users.shape[0]
        num_items = self.num_items

        # Glue: gathers + batch padding (padded rows are zero in both student
        # and teacher => 0 contribution to the SSE).
        # TODO(synk): fold the user gather into the kernel with
        # PrefetchScalarGridSpec(num_scalar_prefetch=1) + row-gather BlockSpec.
        us = self.student_user[batch_users].astype(self.table_dtype)
        ut = lax.stop_gradient(self.teacher_user)[batch_users].astype(self.table_dtype)
        tb, b_pad = _choose_batch_tile(batch)
        if b_pad != batch:
            us = jnp.pad(us, ((0, b_pad - batch), (0, 0)))
            ut = jnp.pad(ut, ((0, b_pad - batch), (0, 0)))

        # Hot path: fused Pallas kernel (f32 math, bf16 rating outputs).
        rs_p, rt_p, sse = kd_ratings_and_sse(
            us, self.student_item_t,
            ut, lax.stop_gradient(self.teacher_item_t),
            emit_rt=return_teacher_ratings,
            out_dtype=self.ratings_dtype, tb=tb)

        # BPR base loss gathers straight from the padded matrix (indices < N,
        # rows < B, so padding is never read) — no extra B x N slice copy.
        row = jnp.arange(batch)
        r_pos = rs_p[row, pos_items].astype(jnp.float32)
        r_neg = rs_p[row, neg_items].astype(jnp.float32)
        base_loss = -jnp.mean(jax.nn.log_sigmoid(r_pos - r_neg))

        # Padded rows/columns contribute exactly 0 to sse => exact mean.
        kd_loss = sse / jnp.float32(batch * num_items)
        loss = base_loss + self.lmbda * kd_loss

        # Slice only at the API boundary, and only if padding actually happened.
        need_slice = (b_pad != batch) or (self.n_pad != num_items)
        rs = rs_p[:batch, :num_items] if need_slice else rs_p
        rt = None
        if return_teacher_ratings:
            rt = rt_p[:batch, :num_items] if need_slice else rt_p
        return loss, rs, rt

    # TODO(synk): autodiff through pl.pallas_call needs a custom_vjp for the
    # fused kernel (student is trainable); forward-only here.
    # TODO(synk): get_user_item_ratings / train-eval mode bookkeeping /
    # get_params_to_update are abstract or pure Python-state in BaseKD and have
    # no kernel equivalent.


if __name__ == "__main__":
    key = jax.random.PRNGKey(0)
    num_users, num_items = 32, 256
    d_teacher, d_student = 32, 16
    B = 8

    model = BaseKDPallas(num_users, num_items, d_teacher, d_student,
                         lmbda=0.5, key=key)

    kb, kp, kn = jax.random.split(jax.random.PRNGKey(1), 3)
    batch_users = jax.random.randint(kb, (B,), 0, num_users, dtype=jnp.int32)
    pos_items = jax.random.randint(kp, (B,), 0, num_items, dtype=jnp.int32)
    neg_items = jax.random.randint(kn, (B,), 0, num_items, dtype=jnp.int32)

    loss, rs, rt = model.forward((batch_users, pos_items, neg_items))
    loss_only = model.get_loss((batch_users, pos_items, neg_items))
    rs_only = model.get_ratings(batch_users)
    jax.block_until_ready((loss, rs, rt, loss_only, rs_only))

    # --- pure-JAX reference (same bf16-cast operands, f32 accumulation) ------
    us_ref = model.student_user[batch_users].astype(jnp.bfloat16).astype(jnp.float32)
    ut_ref = model.teacher_user[batch_users].astype(jnp.bfloat16).astype(jnp.float32)
    it_s_ref = model.student_item.astype(jnp.bfloat16).astype(jnp.float32)
    it_t_ref = model.teacher_item.astype(jnp.bfloat16).astype(jnp.float32)
    rs_ref = us_ref @ it_s_ref.T
    rt_ref = ut_ref @ it_t_ref.T

    assert rs.shape == (B, num_items) and rt.shape == (B, num_items)
    assert jnp.allclose(rs.astype(jnp.float32), rs_ref, atol=5e-3, rtol=3e-2)
    assert jnp.allclose(rt.astype(jnp.float32), rt_ref, atol=5e-3, rtol=3e-2)
    assert jnp.allclose(rs_only.astype(jnp.float32), rs_ref, atol=5e-3, rtol=3e-2)

    kd_ref = jnp.mean((rs_ref - rt_ref) ** 2)
    r_pos_ref = rs_ref[jnp.arange(B), pos_items]
    r_neg_ref = rs_ref[jnp.arange(B), neg_items]
    base_ref = -jnp.mean(jax.nn.log_sigmoid(r_pos_ref - r_neg_ref))
    loss_ref = base_ref + model.lmbda * kd_ref
    assert jnp.allclose(loss, loss_ref, atol=5e-3, rtol=1e-2)
    assert jnp.allclose(loss_only, loss, atol=1e-5, rtol=1e-4)

    print("KERNEL_OK")
</pallas_src>

<mosaic_0001>
module attributes {stable_mosaic.version = 11 : i64} {
  func.func @_kd_fwd_kernel(%arg0: i32, %arg1: i32, %arg2: memref<8x16xbf16, #tpu.memory_space<vmem>>, %arg3: memref<16x512xbf16, #tpu.memory_space<vmem>>, %arg4: memref<8x32xbf16, #tpu.memory_space<vmem>>, %arg5: memref<32x512xbf16, #tpu.memory_space<vmem>>, %arg6: memref<8x512xbf16, #tpu.memory_space<vmem>>, %arg7: memref<8x512xbf16, #tpu.memory_space<vmem>>, %arg8: memref<1x8x128xf32, #tpu.memory_space<vmem>>, %arg9: memref<8x1xf32, #tpu.memory_space<vmem>>) attributes {dimension_semantics = [#tpu.dimension_semantics<parallel>, #tpu.dimension_semantics<arbitrary>], iteration_bounds = array<i64: 1, 1>, scalar_prefetch = 0 : i64, scratch_operands = 1 : i64, tpu.core_type = #tpu.core_type<tc>, window_params = [{transform_indices = @transform_0, window_bounds = array<i64: 8, 16>}, {transform_indices = @transform_1, window_bounds = array<i64: 16, 512>}, {transform_indices = @transform_2, window_bounds = array<i64: 8, 32>}, {transform_indices = @transform_3, window_bounds = array<i64: 32, 512>}, {transform_indices = @transform_4, window_bounds = array<i64: 8, 512>}, {transform_indices = @transform_5, window_bounds = array<i64: 8, 512>}, {transform_indices = @transform_6, window_bounds = array<i64: 1, 8, 128>}]} {
    %c0_i32 = arith.constant 0 : i32
    %0 = arith.cmpi eq, %arg1, %c0_i32 : i32
    %1 = arith.extui %0 : i1 to i32
    %c0_i32_0 = arith.constant 0 : i32
    %2 = arith.cmpi ne, %1, %c0_i32_0 : i32
    scf.if %2 {
      %cst_20 = arith.constant 0.000000e+00 : f32
      %23 = vector.broadcast %cst_20 : f32 to vector<8x1xf32>
      %c0_21 = arith.constant 0 : index
      %c0_22 = arith.constant 0 : index
      %24 = vector.load %arg9[%c0_21, %c0_22] : memref<8x1xf32, #tpu.memory_space<vmem>>, vector<8x1xf32>
      tpu.vector_store %arg9[%c0_21, %c0_22], %23 {strides = array<i32>} : memref<8x1xf32, #tpu.memory_space<vmem>>, vector<8x1xf32>,
    } else {
    }
    %c0 = arith.constant 0 : index
    %c0_1 = arith.constant 0 : index
    %3 = vector.load %arg2[%c0, %c0_1] : memref<8x16xbf16, #tpu.memory_space<vmem>>, vector<8x16xbf16>
    %c0_2 = arith.constant 0 : index
    %c0_3 = arith.constant 0 : index
    %4 = vector.load %arg3[%c0_2, %c0_3] : memref<16x512xbf16, #tpu.memory_space<vmem>>, vector<16x512xbf16>
    %cst = arith.constant dense<0.000000e+00> : vector<8x512xf32>
    %5 = tpu.matmul %3, %4, %cst {dimension_numbers = #tpu.dot_dimension_numbers<[1], [0], [0], [1], [0, 0, 1, 1], [], []>} : vector<8x16xbf16>, vector<16x512xbf16>, vector<8x512xf32> -> vector<8x512xf32>
    %c0_4 = arith.constant 0 : index
    %c0_5 = arith.constant 0 : index
    %6 = vector.load %arg4[%c0_4, %c0_5] : memref<8x32xbf16, #tpu.memory_space<vmem>>, vector<8x32xbf16>
    %c0_6 = arith.constant 0 : index
    %c0_7 = arith.constant 0 : index
    %7 = vector.load %arg5[%c0_6, %c0_7] : memref<32x512xbf16, #tpu.memory_space<vmem>>, vector<32x512xbf16>
    %cst_8 = arith.constant dense<0.000000e+00> : vector<8x512xf32>
    %8 = tpu.matmul %6, %7, %cst_8 {dimension_numbers = #tpu.dot_dimension_numbers<[1], [0], [0], [1], [0, 0, 1, 1], [], []>} : vector<8x32xbf16>, vector<32x512xbf16>, vector<8x512xf32> -> vector<8x512xf32>
    %9 = arith.truncf %5 : vector<8x512xf32> to vector<8x512xbf16>
    %c0_9 = arith.constant 0 : index
    %c0_10 = arith.constant 0 : index
    %10 = vector.load %arg6[%c0_9, %c0_10] : memref<8x512xbf16, #tpu.memory_space<vmem>>, vector<8x512xbf16>
    tpu.vector_store %arg6[%c0_9, %c0_10], %9 {strides = array<i32>} : memref<8x512xbf16, #tpu.memory_space<vmem>>, vector<8x512xbf16>,
    %11 = arith.truncf %8 : vector<8x512xf32> to vector<8x512xbf16>
    %c0_11 = arith.constant 0 : index
    %c0_12 = arith.constant 0 : index
    %12 = vector.load %arg7[%c0_11, %c0_12] : memref<8x512xbf16, #tpu.memory_space<vmem>>, vector<8x512xbf16>
    tpu.vector_store %arg7[%c0_11, %c0_12], %11 {strides = array<i32>} : memref<8x512xbf16, #tpu.memory_space<vmem>>, vector<8x512xbf16>,
    %13 = arith.subf %5, %8 : vector<8x512xf32>
    %c0_13 = arith.constant 0 : index
    %c0_14 = arith.constant 0 : index
    %14 = vector.load %arg9[%c0_13, %c0_14] : memref<8x1xf32, #tpu.memory_space<vmem>>, vector<8x1xf32>
    %15 = arith.mulf %13, %13 : vector<8x512xf32>
    %cst_15 = arith.constant dense<0.000000e+00> : vector<8xf32>
    %16 = vector.multi_reduction <add>, %15, %cst_15 [1] : vector<8x512xf32> to vector<8xf32>
    %17 = vector.shape_cast %16 : vector<8xf32> to vector<8x1xf32>
    %18 = arith.addf %14, %17 : vector<8x1xf32>
    %c0_16 = arith.constant 0 : index
    %c0_17 = arith.constant 0 : index
    %19 = vector.load %arg9[%c0_16, %c0_17] : memref<8x1xf32, #tpu.memory_space<vmem>>, vector<8x1xf32>
    tpu.vector_store %arg9[%c0_16, %c0_17], %18 {strides = array<i32>} : memref<8x1xf32, #tpu.memory_space<vmem>>, vector<8x1xf32>,
    %c0_i32_18 = arith.constant 0 : i32
    %20 = arith.cmpi eq, %arg1, %c0_i32_18 : i32
    %21 = arith.extui %20 : i1 to i32
    %c0_i32_19 = arith.constant 0 : i32
    %22 = arith.cmpi ne, %21, %c0_i32_19 : i32
    scf.if %22 {
      %c0_20 = arith.constant 0 : index
      %c0_21 = arith.constant 0 : index
      %23 = vector.load %arg9[%c0_20, %c0_21] : memref<8x1xf32, #tpu.memory_space<vmem>>, vector<8x1xf32>
      %24 = vector.shape_cast %23 : vector<8x1xf32> to vector<1x8x1xf32>
      %cst_22 = arith.constant dense<0.000000e+00> : vector<1xf32>
      %25 = vector.multi_reduction <add>, %24, %cst_22 [1, 2] : vector<1x8x1xf32> to vector<1xf32>
      %26 = vector.shape_cast %25 : vector<1xf32> to vector<1x1x1xf32>
      %27 = vector.extract %26[0, 0, 0] : f32 from vector<1x1x1xf32>
      %28 = vector.broadcast %27 : f32 to vector<1x8x128xf32>
      %c0_23 = arith.constant 0 : index
      %c0_24 = arith.constant 0 : index
      %c0_25 = arith.constant 0 : index
      %29 = vector.load %arg8[%c0_23, %c0_24, %c0_25] : memref<1x8x128xf32, #tpu.memory_space<vmem>>, vector<1x8x128xf32>
      tpu.vector_store %arg8[%c0_23, %c0_24, %c0_25], %28 {strides = array<i32>} : memref<1x8x128xf32, #tpu.memory_space<vmem>>, vector<1x8x128xf32>,
    } else {
    }
    return
  }
  func.func @transform_0(%arg0: i32, %arg1: i32) -> (i32, i32) {
    %c0_i32 = arith.constant 0 : i32
    %c0_i32_0 = arith.constant 0 : i32
    return %arg0, %c0_i32 : i32, i32
  }
  func.func @transform_1(%arg0: i32, %arg1: i32) -> (i32, i32) {
    %c0_i32 = arith.constant 0 : i32
    %c0_i32_0 = arith.constant 0 : i32
    return %c0_i32, %arg1 : i32, i32
  }
  func.func @transform_2(%arg0: i32, %arg1: i32) -> (i32, i32) {
    %c0_i32 = arith.constant 0 : i32
    %c0_i32_0 = arith.constant 0 : i32
    return %arg0, %c0_i32 : i32, i32
  }
  func.func @transform_3(%arg0: i32, %arg1: i32) -> (i32, i32) {
    %c0_i32 = arith.constant 0 : i32
    %c0_i32_0 = arith.constant 0 : i32
    return %c0_i32, %arg1 : i32, i32
  }
  func.func @transform_4(%arg0: i32, %arg1: i32) -> (i32, i32) {
    %c0_i32 = arith.constant 0 : i32
    return %arg0, %arg1 : i32, i32
  }
  func.func @transform_5(%arg0: i32, %arg1: i32) -> (i32, i32) {
    %c0_i32 = arith.constant 0 : i32
    return %arg0, %arg1 : i32, i32
  }
  func.func @transform_6(%arg0: i32, %arg1: i32) -> (i32, i32, i32) {
    %c0_i32 = arith.constant 0 : i32
    %c0_i32_0 = arith.constant 0 : i32
    %c0_i32_1 = arith.constant 0 : i32
    return %arg0, %c0_i32, %c0_i32_0 : i32, i32, i32
  }
}

</mosaic_0001>

<llo_original>
// kernel: tpu_custom_call.1
$region0: #{tpu_custom_call.1}
  #allocation0 [shape = 'u32[]', space=smem, size = 0x4, offset = 0x4, fixed_abs, tag = 'smem constant byte address 0x4 - core index']
  #allocation1 [shape = 'u32[144,128]{1,0:T(1,128)}', space=vmem, size = 0x12000, scoped, tag = 'internal scratch']
  #allocation2 [shape = 'f32[8,1]{1,0:T(8,128)}', space=vmem, size = 0x1000, scoped, tag = 'scratch operand']
  %s0 = inlined_call_operand.hbm [shape: bf16[8,16], index: 0, kind: input, shape index: {}]
  %s1 = inlined_call_operand.hbm [shape: bf16[16,512], index: 1, kind: input, shape index: {}]
  %s2 = inlined_call_operand.hbm [shape: bf16[8,32], index: 2, kind: input, shape index: {}]
  %s3 = inlined_call_operand.hbm [shape: bf16[32,512], index: 3, kind: input, shape index: {}]
  %s4 = inlined_call_operand.hbm [shape: bf16[8,512], index: 4, kind: output, shape index: {0}]
  %s5 = inlined_call_operand.hbm [shape: bf16[8,512], index: 5, kind: output, shape index: {1}]
  %s6 = inlined_call_operand.hbm [shape: f32[1,8,128], index: 6, kind: output, shape index: {2}]
  %7 = xla_tuple %s4, %s5, %s6
  %s8 = sld [smem:[#allocation0]]
  $region66: #{tpu_custom_call.1} parent=0
    _
  %s10 = ssub.s32 1, %s8
  %s11 = scalar_select 0, %s10, %s8
  $region1: #{tpu_custom_call.1} parent=0
    #allocation3 [shape = 'u8[2048]{0}', space=vmem, size = 0x800, scoped, tag = 'input window, operand 0, single buffered']
    #allocation4 [shape = 's32[1]{0}', space=sflag, size = 0x4, scoped, tag = 'scoped memory for tpu_custom_call.1']
    #allocation5 [shape = 's32[1]{0}', space=sflag, size = 0x4, scoped, tag = 'scoped memory for tpu_custom_call.1']
    #allocation6 [shape = 'u8[16384]{0}', space=vmem, size = 0x4000, scoped, tag = 'input window, operand 1, single buffered']
    #allocation7 [shape = 's32[1]{0}', space=sflag, size = 0x4, scoped, tag = 'scoped memory for tpu_custom_call.1']
    #allocation8 [shape = 'u8[2048]{0}', space=vmem, size = 0x800, scoped, tag = 'input window, operand 2, single buffered']
    #allocation9 [shape = 'u8[32768]{0}', space=vmem, size = 0x8000, scoped, tag = 'input window, operand 3, single buffered']
    #allocation10 [shape = 's32[1]{0}', space=sflag, size = 0x4, scoped, tag = 'scoped memory for tpu_custom_call.1']
    #allocation11 [shape = 'u8[8192]{0}', space=vmem, size = 0x2000, scoped, tag = 'output window, operand 0, single buffered']
    #allocation12 [shape = 'u8[8192]{0}', space=vmem, size = 0x2000, scoped, tag = 'output window, operand 1, single buffered']
    #allocation13 [shape = 's32[1]{0}', space=sflag, size = 0x4, scoped, tag = 'scoped memory for tpu_custom_call.1']
    #allocation14 [shape = 'u8[4096]{0}', space=vmem, size = 0x1000, scoped, tag = 'output window, operand 2, single buffered']
    %12 = vsyncpa [#allocation4], 0
    %13 = vsyncpa [#allocation7], 0
    %14 = vsyncpa [#allocation10], 0
    %15 = vsyncpa [#allocation5], 0
    %16 = vsyncpa [#allocation13], 0
    // Predicated region
    $region2: #{tpu_custom_call.1} parent=1 // pred_check
      _
    $region3: #{tpu_custom_call.1} parent=1 // pred_check_branch
      %18 = sbr.rel (0) target = $region5
    $region4: #{tpu_custom_call.1} parent=1 // pred_region
      %s20 = ssub.s32 64, 64
      %21 = vsyncadd [#allocation4], %s20
      %s23 = sshll.u32 [#allocation3], 4
      %s24 = int_to_ptr.vmem [resolvable:$true] %s23
      %26 = dma.hbm_to_vmem [thread:$0]  %s0, 64, %s24, [#allocation4]
    $region5: #{tpu_custom_call.1} parent=1 // pred_fallthru
      _
    // Predicated region
    $region6: #{tpu_custom_call.1} parent=1 // pred_check
      _
    $region7: #{tpu_custom_call.1} parent=1 // pred_check_branch
      %28 = sbr.rel (0) target = $region9
    $region8: #{tpu_custom_call.1} parent=1 // pred_region
      %s30 = ssub.s32 512, 512
      %31 = vsyncadd [#allocation7], %s30
      %s32 = sshll.u32 [#allocation6], 4
      %s33 = int_to_ptr.vmem [resolvable:$true] %s32
      %38 = dma.hbm_to_vmem [thread:$0]  %s1, 512, %s33, [#allocation7], 256, 256, 16
    $region9: #{tpu_custom_call.1} parent=1 // pred_fallthru
      _
    // Predicated region
    $region10: #{tpu_custom_call.1} parent=1 // pred_check
      _
    $region11: #{tpu_custom_call.1} parent=1 // pred_check_branch
      %40 = sbr.rel (0) target = $region13
    $region12: #{tpu_custom_call.1} parent=1 // pred_region
      %s42 = ssub.s32 64, 64
      %43 = vsyncadd [#allocation7], %s42
      %s45 = sshll.u32 [#allocation8], 4
      %s46 = int_to_ptr.vmem [resolvable:$true] %s45
      %48 = dma.hbm_to_vmem [thread:$0]  %s2, 64, %s46, [#allocation7]
    $region13: #{tpu_custom_call.1} parent=1 // pred_fallthru
      _
    // Predicated region
    $region14: #{tpu_custom_call.1} parent=1 // pred_check
      _
    $region15: #{tpu_custom_call.1} parent=1 // pred_check_branch
      %50 = sbr.rel (0) target = $region17
    $region16: #{tpu_custom_call.1} parent=1 // pred_region
      %s52 = ssub.s32 1024, 1024
      %53 = vsyncadd [#allocation10], %s52
      %s54 = sshll.u32 [#allocation9], 4
      %s55 = int_to_ptr.vmem [resolvable:$true] %s54
      %60 = dma.hbm_to_vmem [thread:$0]  %s3, 1024, %s55, [#allocation10], 256, 256, 16
    $region17: #{tpu_custom_call.1} parent=1 // pred_fallthru
      _
    // Predicated region
    $region18: #{tpu_custom_call.1} parent=1 // pred_check
      _
    $region19: #{tpu_custom_call.1} parent=1 // pred_check_branch
      %62 = sbr.rel (0) target = $region21
    $region20: #{tpu_custom_call.1} parent=1 // pred_region
      %63 = dma.done [#allocation4], 64
    $region21: #{tpu_custom_call.1} parent=1 // pred_fallthru
      _
    // Predicated region
    $region22: #{tpu_custom_call.1} parent=1 // pred_check
      _
    $region23: #{tpu_custom_call.1} parent=1 // pred_check_branch
      %65 = sbr.rel (0) target = $region25
    $region24: #{tpu_custom_call.1} parent=1 // pred_region
      %66 = dma.done [#allocation7], 512
    $region25: #{tpu_custom_call.1} parent=1 // pred_fallthru
      _
    // Predicated region
    $region26: #{tpu_custom_call.1} parent=1 // pred_check
      _
    $region27: #{tpu_custom_call.1} parent=1 // pred_check_branch
      %68 = sbr.rel (0) target = $region29
    $region28: #{tpu_custom_call.1} parent=1 // pred_region
      %69 = dma.done [#allocation7], 64
    $region29: #{tpu_custom_call.1} parent=1 // pred_fallthru
      _
    // Predicated region
    $region30: #{tpu_custom_call.1} parent=1 // pred_check
      _
    $region31: #{tpu_custom_call.1} parent=1 // pred_check_branch
      %71 = sbr.rel (0) target = $region33
    $region32: #{tpu_custom_call.1} parent=1 // pred_region
      %72 = dma.done [#allocation10], 1024
    $region33: #{tpu_custom_call.1} parent=1 // pred_fallthru
      _
    %p74 = scmp.eq.s32.totalorder 0, 0
    // Predicated region
    $region34: #{tpu_custom_call.1} parent=1 // pred_check
      %p75 = pneg %p74
    $region35: #{tpu_custom_call.1} parent=1 // pred_check_branch
      %77 = sbr.rel (%p75) target = $region37
    $region36: #{tpu_custom_call.1} parent=1 // pred_region
      %vm78 = vcmask 7168
      %79 = vst.msk [vmem:[#allocation2] sm:$0xff] %vm78, 0.0
    $region37: #{tpu_custom_call.1} parent=1 // pred_fallthru
      _
    %v80 = vld [vmem:[#allocation3] sm:$0xf]
    %v81 = vld [vmem:[#allocation6] sm:$0xff]
    %v82 = vld [vmem:[#allocation6 + $0x8] sm:$0xff]
    %v83 = vld [vmem:[#allocation6 + $0x10] sm:$0xff]
    %v84 = vld [vmem:[#allocation6 + $0x18] sm:$0xff]
    %v89 = vunpack.c.l.b16 %v81
    %v90 = vunpack.c.h.b16 %v81
    %v91 = vunpack.c.l.b16 %v82
    %v92 = vunpack.c.h.b16 %v82
    %v93 = vunpack.c.l.b16 %v83
    %v94 = vunpack.c.h.b16 %v83
    %v95 = vunpack.c.l.b16 %v84
    %v96 = vunpack.c.h.b16 %v84
    %v97 = vpack.c.b16 %v93, %v89
    %v98 = vpack.c.b16 %v94, %v90
    %v99 = vpack.c.b16 %v95, %v91
    %v100 = vpack.c.b16 %v96, %v92
    %vm105 = vcmask 130048
    %v107 = vsel %vm105, %v80, 0
    %109 = vmatprep.subr.bf16.mxu0 0
    %110 = vmatpush1.bf16.msra.mxu0 0
    %111 = vmatprep.subr.bf16.mxu0 0
    %112 = vmatpush1.bf16.msra.mxu0 0
    %113 = vmatprep.subr.bf16.mxu0 0
    %114 = vmatpush1.bf16.msra.mxu0 0
    %115 = vmatprep.subr.bf16.mxu0 0
    %116 = vmatpush1.bf16.msra.mxu0 0
    %117 = vmatprep.subr.bf16.mxu0 0
    %118 = vmatpush1.bf16.msra.mxu0 0
    %119 = vmatprep.subr.bf16.mxu0 0
    %120 = vmatpush1.bf16.msra.mxu0 0
    %121 = vmatprep.subr.bf16.mxu0 0
    %122 = vmatpush1.bf16.msra.mxu0 0
    %123 = vmatprep.subr.bf16.mxu0 %v98
    %124 = vmatpush1.bf16.msra.mxu0 %v97
    %125 = vmatprep.subr.bf16.mxu0 0
    %126 = vmatpush2.bf16.msra.mxu0 0
    %127 = vmatprep.subr.bf16.mxu0 0
    %128 = vmatpush2.bf16.msra.mxu0 0
    %129 = vmatprep.subr.bf16.mxu0 0
    %130 = vmatpush2.bf16.msra.mxu0 0
    %131 = vmatprep.subr.bf16.mxu0 0
    %132 = vmatpush2.bf16.msra.mxu0 0
    %133 = vmatprep.subr.bf16.mxu0 0
    %134 = vmatpush2.bf16.msra.mxu0 0
    %135 = vmatprep.subr.bf16.mxu0 0
    %136 = vmatpush2.bf16.msra.mxu0 0
    %137 = vmatprep.subr.bf16.mxu0 0
    %138 = vmatpush2.bf16.msra.mxu0 0
    %139 = vmatprep.subr.bf16.mxu0 0
    %140 = vmatpush2.bf16.msra.mxu0 0
    %141 = vmatprep.mubr.bf16.mxu0 0
    %142 = vmatmul.mubr.bf16.gmra.mxu0 %v107
    %v143 = vpop.f32.mrf.mxu0
    %v144 = vadd.f32 0.0, %v143
    %v145 = vpop.f32.mrf.mxu0
    %v146 = vadd.f32 0.0, %v145
    %v147 = vpop.f32.mrf.mxu0
    %v148 = vpop.f32.mrf.mxu0
    %149 = vdwg.mxu0
    %150 = vmatprep.subr.bf16.mxu0 0
    %151 = vmatpush1.bf16.msra.mxu0 0
    %152 = vmatprep.subr.bf16.mxu0 0
    %153 = vmatpush1.bf16.msra.mxu0 0
    %154 = vmatprep.subr.bf16.mxu0 0
    %155 = vmatpush1.bf16.msra.mxu0 0
    %156 = vmatprep.subr.bf16.mxu0 0
    %157 = vmatpush1.bf16.msra.mxu0 0
    %158 = vmatprep.subr.bf16.mxu0 0
    %159 = vmatpush1.bf16.msra.mxu0 0
    %160 = vmatprep.subr.bf16.mxu0 0
    %161 = vmatpush1.bf16.msra.mxu0 0
    %162 = vmatprep.subr.bf16.mxu0 0
    %163 = vmatpush1.bf16.msra.mxu0 0
    %164 = vmatprep.subr.bf16.mxu0 %v100
    %165 = vmatpush1.bf16.msra.mxu0 %v99
    %166 = vmatprep.subr.bf16.mxu0 0
    %167 = vmatpush2.bf16.msra.mxu0 0
    %168 = vmatprep.subr.bf16.mxu0 0
    %169 = vmatpush2.bf16.msra.mxu0 0
    %170 = vmatprep.subr.bf16.mxu0 0
    %171 = vmatpush2.bf16.msra.mxu0 0
    %172 = vmatprep.subr.bf16.mxu0 0
    %173 = vmatpush2.bf16.msra.mxu0 0
    %174 = vmatprep.subr.bf16.mxu0 0
    %175 = vmatpush2.bf16.msra.mxu0 0
    %176 = vmatprep.subr.bf16.mxu0 0
    %177 = vmatpush2.bf16.msra.mxu0 0
    %178 = vmatprep.subr.bf16.mxu0 0
    %179 = vmatpush2.bf16.msra.mxu0 0
    %180 = vmatprep.subr.bf16.mxu0 0
    %181 = vmatpush2.bf16.msra.mxu0 0
    %182 = vmatprep.mubr.bf16.mxu0 0
    %183 = vmatmul.mubr.bf16.gmra.mxu0 %v107
    %v184 = vpop.f32.mrf.mxu0
    %v185 = vadd.f32 0.0, %v184
    %v186 = vpop.f32.mrf.mxu0
    %v187 = vadd.f32 0.0, %v186
    %v188 = vpop.f32.mrf.mxu0
    %v189 = vpop.f32.mrf.mxu0
    %190 = vdwg.mxu0
    %v191 = vld [vmem:[#allocation8] sm:$0xf]
    %v192 = vld [vmem:[#allocation9] sm:$0xff]
    %v193 = vld [vmem:[#allocation9 + $0x8] sm:$0xff]
    %v194 = vld [vmem:[#allocation9 + $0x10] sm:$0xff]
    %v195 = vld [vmem:[#allocation9 + $0x18] sm:$0xff]
    %v196 = vld [vmem:[#allocation9 + $0x20] sm:$0xff]
    %v197 = vld [vmem:[#allocation9 + $0x28] sm:$0xff]
    %v198 = vld [vmem:[#allocation9 + $0x30] sm:$0xff]
    %v199 = vld [vmem:[#allocation9 + $0x38] sm:$0xff]
    %v208 = vunpack.c.l.b16 %v192
    %v209 = vunpack.c.h.b16 %v192
    %v210 = vunpack.c.l.b16 %v193
    %v211 = vunpack.c.h.b16 %v193
    %v212 = vunpack.c.l.b16 %v194
    %v213 = vunpack.c.h.b16 %v194
    %v214 = vunpack.c.l.b16 %v195
    %v215 = vunpack.c.h.b16 %v195
    %v216 = vunpack.c.l.b16 %v196
    %v217 = vunpack.c.h.b16 %v196
    %v218 = vunpack.c.l.b16 %v197
    %v219 = vunpack.c.h.b16 %v197
    %v220 = vunpack.c.l.b16 %v198
    %v221 = vunpack.c.h.b16 %v198
    %v222 = vunpack.c.l.b16 %v199
    %v223 = vunpack.c.h.b16 %v199
    %v224 = vpack.c.b16 %v212, %v208
    %v225 = vpack.c.b16 %v213, %v209
    %v226 = vpack.c.b16 %v214, %v210
    %v227 = vpack.c.b16 %v215, %v211
    %v228 = vpack.c.b16 %v220, %v216
    %v229 = vpack.c.b16 %v221, %v217
    %v230 = vpack.c.b16 %v222, %v218
    %v231 = vpack.c.b16 %v223, %v219
    %vm240 = vcmask 261120
    %v242 = vsel %vm240, %v191, 0
    %244 = vmatprep.subr.bf16.mxu0 0
    %245 = vmatpush1.bf16.msra.mxu0 0
    %246 = vmatprep.subr.bf16.mxu0 0
    %247 = vmatpush1.bf16.msra.mxu0 0
    %248 = vmatprep.subr.bf16.mxu0 0
    %249 = vmatpush1.bf16.msra.mxu0 0
    %250 = vmatprep.subr.bf16.mxu0 0
    %251 = vmatpush1.bf16.msra.mxu0 0
    %252 = vmatprep.subr.bf16.mxu0 0
    %253 = vmatpush1.bf16.msra.mxu0 0
    %254 = vmatprep.subr.bf16.mxu0 0
    %255 = vmatpush1.bf16.msra.mxu0 0
    %256 = vmatprep.subr.bf16.mxu0 %v229
    %257 = vmatpush1.bf16.msra.mxu0 %v228
    %258 = vmatprep.subr.bf16.mxu0 %v225
    %259 = vmatpush1.bf16.msra.mxu0 %v224
    %260 = vmatprep.subr.bf16.mxu0 0
    %261 = vmatpush2.bf16.msra.mxu0 0
    %262 = vmatprep.subr.bf16.mxu0 0
    %263 = vmatpush2.bf16.msra.mxu0 0
    %264 = vmatprep.subr.bf16.mxu0 0
    %265 = vmatpush2.bf16.msra.mxu0 0
    %266 = vmatprep.subr.bf16.mxu0 0
    %267 = vmatpush2.bf16.msra.mxu0 0
    %268 = vmatprep.subr.bf16.mxu0 0
    %269 = vmatpush2.bf16.msra.mxu0 0
    %270 = vmatprep.subr.bf16.mxu0 0
    %271 = vmatpush2.bf16.msra.mxu0 0
    %272 = vmatprep.subr.bf16.mxu0 0
    %273 = vmatpush2.bf16.msra.mxu0 0
    %274 = vmatprep.subr.bf16.mxu0 0
    %275 = vmatpush2.bf16.msra.mxu0 0
    %276 = vmatprep.mubr.bf16.mxu0 0
    %277 = vmatmul.mubr.bf16.gmra.mxu0 %v242
    %v278 = vpop.f32.mrf.mxu0
    %v279 = vadd.f32 0.0, %v278
    %v280 = vpop.f32.mrf.mxu0
    %v281 = vadd.f32 0.0, %v280
    %v282 = vpop.f32.mrf.mxu0
    %v283 = vpop.f32.mrf.mxu0
    %284 = vdwg.mxu0
    %285 = vmatprep.subr.bf16.mxu0 0
    %286 = vmatpush1.bf16.msra.mxu0 0
    %287 = vmatprep.subr.bf16.mxu0 0
    %288 = vmatpush1.bf16.msra.mxu0 0
    %289 = vmatprep.subr.bf16.mxu0 0
    %290 = vmatpush1.bf16.msra.mxu0 0
    %291 = vmatprep.subr.bf16.mxu0 0
    %292 = vmatpush1.bf16.msra.mxu0 0
    %293 = vmatprep.subr.bf16.mxu0 0
    %294 = vmatpush1.bf16.msra.mxu0 0
    %295 = vmatprep.subr.bf16.mxu0 0
    %296 = vmatpush1.bf16.msra.mxu0 0
    %297 = vmatprep.subr.bf16.mxu0 %v231
    %298 = vmatpush1.bf16.msra.mxu0 %v230
    %299 = vmatprep.subr.bf16.mxu0 %v227
    %300 = vmatpush1.bf16.msra.mxu0 %v226
    %301 = vmatprep.subr.bf16.mxu0 0
    %302 = vmatpush2.bf16.msra.mxu0 0
    %303 = vmatprep.subr.bf16.mxu0 0
    %304 = vmatpush2.bf16.msra.mxu0 0
    %305 = vmatprep.subr.bf16.mxu0 0
    %306 = vmatpush2.bf16.msra.mxu0 0
    %307 = vmatprep.subr.bf16.mxu0 0
    %308 = vmatpush2.bf16.msra.mxu0 0
    %309 = vmatprep.subr.bf16.mxu0 0
    %310 = vmatpush2.bf16.msra.mxu0 0
    %311 = vmatprep.subr.bf16.mxu0 0
    %312 = vmatpush2.bf16.msra.mxu0 0
    %313 = vmatprep.subr.bf16.mxu0 0
    %314 = vmatpush2.bf16.msra.mxu0 0
    %315 = vmatprep.subr.bf16.mxu0 0
    %316 = vmatpush2.bf16.msra.mxu0 0
    %317 = vmatprep.mubr.bf16.mxu0 0
    %318 = vmatmul.mubr.bf16.gmra.mxu0 %v242
    %v319 = vpop.f32.mrf.mxu0
    %v320 = vadd.f32 0.0, %v319
    %v321 = vpop.f32.mrf.mxu0
    %v322 = vadd.f32 0.0, %v321
    %v323 = vpop.f32.mrf.mxu0
    %v324 = vpop.f32.mrf.mxu0
    %325 = vdwg.mxu0
    %v326 = vpack.c.bf16 %v144, %v144
    %v327 = vpack.c.bf16 %v146, %v146
    %v328 = vpack.c.bf16 %v185, %v185
    %v329 = vpack.c.bf16 %v187, %v187
    %v334 = vunpack.c.l.b16 %v326
    %v335 = vunpack.c.l.b16 %v327
    %v336 = vunpack.c.l.b16 %v328
    %v337 = vunpack.c.l.b16 %v329
    %v338 = vpack.c.b16 %v335, %v334
    %v339 = vpack.c.b16 %v337, %v336
    %342 = vst [vmem:[#allocation11] sm:$0xff] %v338
    %343 = vst [vmem:[#allocation11 + $0x8] sm:$0xff] %v339
    %v344 = vpack.c.bf16 %v279, %v279
    %v345 = vpack.c.bf16 %v281, %v281
    %v346 = vpack.c.bf16 %v320, %v320
    %v347 = vpack.c.bf16 %v322, %v322
    %v352 = vunpack.c.l.b16 %v344
    %v353 = vunpack.c.l.b16 %v345
    %v354 = vunpack.c.l.b16 %v346
    %v355 = vunpack.c.l.b16 %v347
    %v356 = vpack.c.b16 %v353, %v352
    %v357 = vpack.c.b16 %v355, %v354
    %360 = vst [vmem:[#allocation12] sm:$0xff] %v356
    %361 = vst [vmem:[#allocation12 + $0x8] sm:$0xff] %v357
    %v362 = vsub.f32 %v144, %v279
    %v363 = vsub.f32 %v146, %v281
    %v364 = vsub.f32 %v185, %v320
    %v365 = vsub.f32 %v187, %v322
    %v366 = vld [vmem:[#allocation2] sm:$0xff]
    %v367 = vmul.f32 %v362, %v362
    %v368 = vmul.f32 %v363, %v363
    %v369 = vmul.f32 %v364, %v364
    %v370 = vmul.f32 %v365, %v365
    %v371 = vadd.f32 %v367, %v368
    %v372 = vadd.f32 %v371, %v369
    %v373 = vadd.f32 %v372, %v370
    %374 = vadd.xlane.f32.xlu0 %v373
    %v375 = vpop.xlane.xlu0 %374
    %v376 = vadd.f32 %v366, %v375
    %vm377 = vcmask 7168
    %378 = vst.msk [vmem:[#allocation2] sm:$0xff] %vm377, %v376
    // Predicated region
    $region38: #{tpu_custom_call.1} parent=1 // pred_check
      %p379 = pneg %p74
    $region39: #{tpu_custom_call.1} parent=1 // pred_check_branch
      %381 = sbr.rel (%p379) target = $region41
    $region40: #{tpu_custom_call.1} parent=1 // pred_region
      %v382 = vld [vmem:[#allocation2] sm:$0xff]
      %v383 = vsel %vm377, %v382, 0.0
      %384 = vadd.xlane.f32.xlu0 %v383
      %v385 = vpop.xlane.xlu0 %384
      %v386 = vrot.slane %v385, 4
      %v387 = vadd.f32 %v385, %v386
      %v388 = vrot.slane %v387, 2
      %v389 = vadd.f32 %v387, %v388
      %v390 = vrot.slane %v389, 1
      %v391 = vadd.f32 %v389, %v390
      %s392 = vtos %v391
      %v393 = vstv %s392
      %394 = vst [vmem:[#allocation14] sm:$0xff] %v393
    $region41: #{tpu_custom_call.1} parent=1 // pred_fallthru
      _
    // Predicated region
    $region42: #{tpu_custom_call.1} parent=1 // pred_check
      _
    $region43: #{tpu_custom_call.1} parent=1 // pred_check_branch
      %396 = sbr.rel (0) target = $region45
    $region44: #{tpu_custom_call.1} parent=1 // pred_region
      %s398 = ssub.s32 256, 256
      %399 = vsyncadd [#allocation5], %s398
      %s401 = sshll.u32 [#allocation11], 4
      %s402 = int_to_ptr.vmem [resolvable:$true] %s401
      %404 = dma.vmem_to_hbm [thread:$0]  %s402, 256, %s4, [#allocation5]
    $region45: #{tpu_custom_call.1} parent=1 // pred_fallthru
      _
    // Predicated region
    $region46: #{tpu_custom_call.1} parent=1 // pred_check
      _
    $region47: #{tpu_custom_call.1} parent=1 // pred_check_branch
      %406 = sbr.rel (0) target = $region49
    $region48: #{tpu_custom_call.1} parent=1 // pred_region
      %s408 = ssub.s32 256, 256
      %409 = vsyncadd [#allocation13], %s408
      %s411 = sshll.u32 [#allocation12], 4
      %s412 = int_to_ptr.vmem [resolvable:$true] %s411
      %414 = dma.vmem_to_hbm [thread:$0]  %s412, 256, %s5, [#allocation13]
    $region49: #{tpu_custom_call.1} parent=1 // pred_fallthru
      _
    // Predicated region
    $region50: #{tpu_custom_call.1} parent=1 // pred_check
      _
    $region51: #{tpu_custom_call.1} parent=1 // pred_check_branch
      %416 = sbr.rel (0) target = $region53
    $region52: #{tpu_custom_call.1} parent=1 // pred_region
      %s418 = ssub.s32 128, 128
      %419 = vsyncadd [#allocation13], %s418
      %s421 = sshll.u32 [#allocation14], 4
      %s422 = int_to_ptr.vmem [resolvable:$true] %s421
      %424 = dma.vmem_to_hbm [thread:$0]  %s422, 128, %s6, [#allocation13]
    $region53: #{tpu_custom_call.1} parent=1 // pred_fallthru
      _
    // Predicated region
    $region54: #{tpu_custom_call.1} parent=1 // pred_check
      _
    $region55: #{tpu_custom_call.1} parent=1 // pred_check_branch
      %426 = sbr.rel (0) target = $region57
    $region56: #{tpu_custom_call.1} parent=1 // pred_region
      %427 = dma.done [#allocation5], 256
    $region57: #{tpu_custom_call.1} parent=1 // pred_fallthru
      _
    // Predicated region
    $region58: #{tpu_custom_call.1} parent=1 // pred_check
      _
    $region59: #{tpu_custom_call.1} parent=1 // pred_check_branch
      %429 = sbr.rel (0) target = $region61
    $region60: #{tpu_custom_call.1} parent=1 // pred_region
      %430 = dma.done [#allocation13], 256
    $region61: #{tpu_custom_call.1} parent=1 // pred_fallthru
      _
    // Predicated region
    $region62: #{tpu_custom_call.1} parent=1 // pred_check
      _
    $region63: #{tpu_custom_call.1} parent=1 // pred_check_branch
      %432 = sbr.rel (0) target = $region65
    $region64: #{tpu_custom_call.1} parent=1 // pred_region
      %433 = dma.done [#allocation13], 128
    $region65: #{tpu_custom_call.1} parent=1 // pred_fallthru
      _
    %434 = vsyncpa [#allocation4], 1
    %435 = vsyncpa [#allocation7], 1
    %436 = vsyncpa [#allocation10], 1
    %437 = vsyncpa [#allocation5], 1
    %438 = vsyncpa [#allocation13], 1

</llo_original>
